<compile_context>
chip_gen: v5e
topology: v5e:2x2
jax: 0.10.0
libtpu: 0.0.40
codegen_flags: <defaults>
</compile_context>

<pallas_src>
import jax
import jax.numpy as jnp
from jax.experimental import pallas as pl
from jax.experimental.pallas import tpu as pltpu


ACTIVATION = jnp.tanh  # the Callable passed to FCN2Network.__init__


def fcn2_kernel(x_ref, w_ref, o_ref):
    """Collapsed two-layer FCN forward for one batch tile.

    x_ref: (TB, D)  input tile (batch rows on sublanes), streamed
    w_ref: (1, D)   effective weight row  w_eff = W2 @ W1, resident
    o_ref: (1, TB)  lane-dense output tile (batch on lanes)
    """
    # Single matvec: contract D on both operands -> (1, TB), f32 accumulate.
    h2 = jax.lax.dot_general(
        w_ref[...], x_ref[...],
        dimension_numbers=(((1,), (1,)), ((), ())),
        preferred_element_type=jnp.float32,
    )
    # Activation applied after fc2, exactly as in the reference forward().
    o_ref[...] = ACTIVATION(h2).astype(o_ref.dtype)


def _pick_batch_tile(batch: int) -> int:
    """Largest lane-dense tile in 128..2048 that divides the batch, preferring
    >=2 grid steps (v7x megacore).  Falls back to the whole batch as a single
    full-array block (always legal regardless of (8,128) divisibility)."""
    for tb in (2048, 1024, 512, 256, 128):
        if batch % tb == 0 and batch // tb >= 2:
            return tb
    return batch


@jax.jit
def fcn2_forward(x, w1, w2):
    """x: (batch, D), w1: (H, D), w2: (1, H)  ->  (batch, 1)."""
    batch, input_dim = x.shape

    # Collapse fc1+fc2 (exact: activation follows fc2).  Tiny (1,H)x(H,D)
    # matmul done once by XLA outside the kernel.
    w_eff = jnp.dot(w2, w1, preferred_element_type=jnp.float32).astype(x.dtype)

    tb = _pick_batch_tile(batch)
    grid = (pl.cdiv(batch, tb),)

    # Explicit VMEM budget: double-buffered lane-padded x tile (~tb*512 B per
    # buffer) plus output/weight slivers; generous headroom, well under v7x's
    # 64 MiB physical VMEM.
    vmem_limit = max(4 << 20, 8 * tb * 512)

    out = pl.pallas_call(
        fcn2_kernel,
        out_shape=jax.ShapeDtypeStruct((1, batch), x.dtype),
        grid=grid,
        in_specs=[
            pl.BlockSpec((tb, input_dim), lambda i: (i, 0)),   # x tile, streamed
            pl.BlockSpec((1, input_dim), lambda i: (0, 0)),    # w_eff resident
        ],
        out_specs=pl.BlockSpec((1, tb), lambda i: (0, i)),     # lane-dense slab
        compiler_params=pltpu.CompilerParams(
            dimension_semantics=("parallel",),
            vmem_limit_bytes=vmem_limit,
        ),
    )(x, w_eff)

    # (1, batch) -> (batch, 1): pure layout reshape in the wrapper.
    return out.reshape(batch, 1)


def init_params(key, input_dim, hidden_width, weight_sigma=(1.0, 1.0)):
    """Mirrors FCN2Network._initialize_weights: N(0, sqrt(sigma)) per layer."""
    k1, k2 = jax.random.split(key)
    w1 = (weight_sigma[0] ** 0.5) * jax.random.normal(
        k1, (hidden_width, input_dim), dtype=jnp.float32
    )
    w2 = (weight_sigma[1] ** 0.5) * jax.random.normal(
        k2, (1, hidden_width), dtype=jnp.float32
    )
    return w1, w2


if __name__ == "__main__":
    key = jax.random.PRNGKey(0)
    k_x, k_w = jax.random.split(key)

    batch, input_dim, hidden_width = 256, 16, 32   # grid of 2 batch tiles
    weight_sigma = (1.0, 0.5)

    x = jax.random.normal(k_x, (batch, input_dim), dtype=jnp.float32)
    w1, w2 = init_params(k_w, input_dim, hidden_width, weight_sigma)

    out = jax.block_until_ready(fcn2_forward(x, w1, w2))

    # pure-JAX reference (same two-matmul math as the PyTorch forward)
    ref = ACTIVATION((x @ w1.T) @ w2.T)
    assert out.shape == (batch, 1)
    assert jnp.allclose(out, ref, atol=1e-4, rtol=1e-4), "mismatch vs reference"

    print("KERNEL_OK")
</pallas_src>

<mosaic_0001>
module attributes {stable_mosaic.version = 11 : i64} {
  func.func @fcn2_kernel(%arg0: i32, %arg1: memref<128x16xf32, #tpu.memory_space<vmem>>, %arg2: memref<1x16xf32, #tpu.memory_space<vmem>>, %arg3: memref<1x128xf32, #tpu.memory_space<vmem>>) attributes {dimension_semantics = [#tpu.dimension_semantics<parallel>], iteration_bounds = array<i64: 2>, scalar_prefetch = 0 : i64, scratch_operands = 0 : i64, tpu.core_type = #tpu.core_type<tc>, window_params = [{transform_indices = @transform_0, window_bounds = array<i64: 128, 16>}, {pipeline_mode = #tpu.pipeline_mode<synchronous>, transform_indices = @transform_1, window_bounds = array<i64: 1, 16>}, {transform_indices = @transform_2, window_bounds = array<i64: 1, 128>}]} {
    %c0 = arith.constant 0 : index
    %c0_0 = arith.constant 0 : index
    %0 = vector.load %arg2[%c0, %c0_0] : memref<1x16xf32, #tpu.memory_space<vmem>>, vector<1x16xf32>
    %c0_1 = arith.constant 0 : index
    %c0_2 = arith.constant 0 : index
    %1 = vector.load %arg1[%c0_1, %c0_2] : memref<128x16xf32, #tpu.memory_space<vmem>>, vector<128x16xf32>
    %cst = arith.constant dense<0.000000e+00> : vector<1x128xf32>
    %2 = tpu.matmul %0, %1, %cst {dimension_numbers = #tpu.dot_dimension_numbers<[1], [1], [0], [0], [0, 0, 1, 0], [], []>} : vector<1x16xf32>, vector<128x16xf32>, vector<1x128xf32> -> vector<1x128xf32>
    %3 = math.tanh %2 : vector<1x128xf32>
    %c0_3 = arith.constant 0 : index
    %c0_4 = arith.constant 0 : index
    %4 = vector.load %arg3[%c0_3, %c0_4] : memref<1x128xf32, #tpu.memory_space<vmem>>, vector<1x128xf32>
    tpu.vector_store %arg3[%c0_3, %c0_4], %3 {strides = array<i32>} : memref<1x128xf32, #tpu.memory_space<vmem>>, vector<1x128xf32>,
    return
  }
  func.func @transform_0(%arg0: i32) -> (i32, i32) {
    %c0_i32 = arith.constant 0 : i32
    %c0_i32_0 = arith.constant 0 : i32
    return %arg0, %c0_i32 : i32, i32
  }
  func.func @transform_1(%arg0: i32) -> (i32, i32) {
    %c0_i32 = arith.constant 0 : i32
    %c0_i32_0 = arith.constant 0 : i32
    %c0_i32_1 = arith.constant 0 : i32
    return %c0_i32, %c0_i32_0 : i32, i32
  }
  func.func @transform_2(%arg0: i32) -> (i32, i32) {
    %c0_i32 = arith.constant 0 : i32
    %c0_i32_0 = arith.constant 0 : i32
    return %c0_i32, %arg0 : i32, i32
  }
}

</mosaic_0001>

<llo_original>
// kernel: fcn2_forward.1
$region0: #{fcn2_forward.1}
  #allocation0 [shape = 'u32[]', space=smem, size = 0x4, offset = 0x4, fixed_abs, tag = 'smem constant byte address 0x4 - core index']
  #allocation1 [shape = 'u32[72,128]{1,0:T(1,128)}', space=vmem, size = 0x9000, scoped, tag = 'internal scratch']
  %s0 = inlined_call_operand.vmem [shape: f32[256,16], index: 0, kind: input, shape index: {}]
  %s1 = inlined_call_operand.vmem [shape: f32[1,16], index: 1, kind: input, shape index: {}]
  %s2 = inlined_call_operand.hbm [shape: f32[1,256], index: 2, kind: output, shape index: {}]
  %s3 = sld [smem:[#allocation0]]
  $region41: #{fcn2_forward.1} parent=0
    _
  %s5 = ssub.s32 1, %s3
  %s6 = scalar_select 0, %s5, %s3
  $region1: #{fcn2_forward.1} parent=0
    #allocation2 [shape = 'u8[1024]{0}', space=vmem, size = 0x400, scoped, tag = 'output window, operand 0']
    #allocation3 [shape = 's32[2]{0}', space=sflag, size = 0x8, scoped, tag = 'scoped memory for fcn2_forward.1']
    %7 = vsyncpa [#allocation3], 0
    %s8 = scalar_lea.sflag [#allocation3], 1
    %9 = vsyncpa %s8, 0
    loop: start=0, step=1, limit=4
    $region2: #{fcn2_forward.1} parent=1 // loop_pre_header
      _
    $region3: #{fcn2_forward.1} parent=1 // loop_header
      %s11 = sphi 0, %s15
      %p12 = scmp.ge.s32.totalorder %s11, 4
      %s21 = sphi 0, %s23
      %s24 = sphi 0, %s21
      %s25 = sphi 0, %s24
      %s41 = sphi 0, %s25
      %s45 = sphi 0, %s45
      %s47 = sphi 0, %s45
      %s48 = sphi 0, %s47
      %s62 = sphi 0, %s48
      %s68 = sphi 0, %s70
      %s71 = sphi 0, %s68
      %s72 = sphi 0, %s71
      %s88 = sphi 0, %s72
    $region4: #{fcn2_forward.1} parent=1 // loop_header_branch
      %14 = sbr.rel (%p12) target = $region8
    $region5: #{fcn2_forward.1} parent=1 // loop_body
      %s16 = ssub.s32 %s11, 1
      %s17 = ssub.s32 %s11, 2
      %s18 = sadd.s32 %s11, 1
      %s19 = ssub.s32 %s11, %s18
      %p20 = scmp.eq.s32.totalorder %s19, 0
      %s22 = sadd.s32 %s21, 1
      %s23 = scalar_select %p20, %s21, %s22
      %p26 = pneg %p20
      %p27 = scmp.eq.s32.totalorder %s11, 1
      %p28 = por %p26, %p27
      %p29 = scmp.ne.s32.totalorder %s21, %s24
      %p30 = scmp.eq.s32.totalorder %s11, 0
      %p31 = por %p29, %p30
      %p32 = scmp.ne.s32.totalorder %s21, %s24
      %p33 = scmp.eq.s32.totalorder %s16, 1
      %p34 = por %p32, %p33
      %p35 = scmp.ne.s32.totalorder %s24, %s25
      %p36 = scmp.eq.s32.totalorder %s16, 0
      %p37 = por %p35, %p36
      %p38 = scmp.ne.s32.totalorder %s24, %s25
      %p39 = scmp.eq.s32.totalorder %s17, 1
      %p40 = por %p38, %p39
      %p42 = scmp.ne.s32.totalorder %s25, %s41
      %p43 = scmp.eq.s32.totalorder %s17, 0
      %p44 = por %p42, %p43
      %s46 = sadd.s32 %s45, 1
      %p49 = scmp.eq.s32.totalorder %s11, 1
      %p50 = scmp.ne.s32.totalorder %s45, %s47
      %p51 = scmp.eq.s32.totalorder %s11, 0
      %p52 = por %p50, %p51
      %p53 = scmp.ne.s32.totalorder %s45, %s47
      %p54 = scmp.eq.s32.totalorder %s16, 1
      %p55 = por %p53, %p54
      %p56 = scmp.ne.s32.totalorder %s47, %s48
      %p57 = scmp.eq.s32.totalorder %s16, 0
      %p58 = por %p56, %p57
      %p59 = scmp.ne.s32.totalorder %s47, %s48
      %p60 = scmp.eq.s32.totalorder %s17, 1
      %p61 = por %p59, %p60
      %p63 = scmp.ne.s32.totalorder %s48, %s62
      %p64 = scmp.eq.s32.totalorder %s17, 0
      %p65 = por %p63, %p64
      %s66 = ssub.s32 %s11, %s18
      %p67 = scmp.eq.s32.totalorder %s66, 0
      %s69 = sadd.s32 %s68, 1
      %s70 = scalar_select %p67, %s68, %s69
      %p73 = pneg %p67
      %p74 = scmp.eq.s32.totalorder %s11, 1
      %p75 = por %p73, %p74
      %p76 = scmp.ne.s32.totalorder %s68, %s71
      %p77 = scmp.eq.s32.totalorder %s11, 0
      %p78 = por %p76, %p77
      %p79 = scmp.ne.s32.totalorder %s68, %s71
      %p80 = scmp.eq.s32.totalorder %s16, 1
      %p81 = por %p79, %p80
      %p82 = scmp.ne.s32.totalorder %s71, %s72
      %p83 = scmp.eq.s32.totalorder %s16, 0
      %p84 = por %p82, %p83
      %p85 = scmp.ne.s32.totalorder %s71, %s72
      %p86 = scmp.eq.s32.totalorder %s17, 1
      %p87 = por %p85, %p86
      %p89 = scmp.ne.s32.totalorder %s72, %s88
      %p90 = scmp.eq.s32.totalorder %s17, 0
      %p91 = por %p89, %p90
      %p92 = scmp.le.s32.totalorder 1, %s11
      %p93 = scmp.lt.s32.totalorder %s11, 3
      %p94 = pnand %p92, %p93
      %p95 = pneg %p94
      // Predicated region
      $region9: #{fcn2_forward.1} parent=5 // pred_check
        _
      $region10: #{fcn2_forward.1} parent=5 // pred_check_branch
        %97 = sbr.rel (%p94) target = $region12
      $region11: #{fcn2_forward.1} parent=5 // pred_region
        %s98 = ssub.s32 %s11, 1
        // Predicated region
        $region13: #{fcn2_forward.1} parent=11 // pred_check
          %p99 = pneg %p58
        $region14: #{fcn2_forward.1} parent=11 // pred_check_branch
          %101 = sbr.rel (%p99) target = $region16
        $region15: #{fcn2_forward.1} parent=11 // pred_region
          _
        $region16: #{fcn2_forward.1} parent=11 // pred_fallthru
          _
      $region12: #{fcn2_forward.1} parent=5 // pred_fallthru
        _
      %p102 = scmp.lt.s32.totalorder %s11, 2
      // Predicated region
      $region17: #{fcn2_forward.1} parent=5 // pred_check
        %p103 = pneg %p102
      $region18: #{fcn2_forward.1} parent=5 // pred_check_branch
        %105 = sbr.rel (%p103) target = $region20
      $region19: #{fcn2_forward.1} parent=5 // pred_region
        // Predicated region
        $region21: #{fcn2_forward.1} parent=19 // pred_check
          %p106 = pneg %p31
        $region22: #{fcn2_forward.1} parent=19 // pred_check_branch
          %108 = sbr.rel (%p106) target = $region24
        $region23: #{fcn2_forward.1} parent=19 // pred_region
          %s109 = smul.u32 16, %s11
          %p110 = scmp.lt.s32.totalorder %s109, 31
          %s111 = scalar_select %p110, %s109, 31
          %s112 = smul.addr %s111, 8
          %s113 = scalar_lea.vmem %s0, %s112
          %s114 = smul.u32 16, %s11
        $region24: #{fcn2_forward.1} parent=19 // pred_fallthru
          _
      $region20: #{fcn2_forward.1} parent=5 // pred_fallthru
        _
      %p115 = scmp.le.s32.totalorder 1, %s11
      %p116 = scmp.lt.s32.totalorder %s11, 3
      %p117 = pnand %p115, %p116
      %p118 = pneg %p117
      // Predicated region
      $region25: #{fcn2_forward.1} parent=5 // pred_check
        _
      $region26: #{fcn2_forward.1} parent=5 // pred_check_branch
        %120 = sbr.rel (%p117) target = $region28
      $region27: #{fcn2_forward.1} parent=5 // pred_region
        %s121 = ssub.s32 %s11, 1
        %s122 = smul.u32 16, %s16
        %p123 = scmp.lt.s32.totalorder %s122, 31
        %s124 = scalar_select %p123, %s122, 31
        %s125 = smul.addr %s124, 8
        %s126 = scalar_lea.vmem %s0, %s125
        %p127 = pneg %p37
        %p128 = pneg %p34
        %p129 = pneg %p58
        %p130 = pneg %p55
        %p131 = pneg %p84
        %p132 = pneg %p81
        %s133 = sand.u32 %s71, 1
        %s134 = scalar_lea.sflag [#allocation3], %s133
        %s135 = sand.u32 %s71, 1
        %s136 = scalar_lea.vmem [#allocation2], %s135
        %s137 = smul.u32 16, %s16
        %p138 = scmp.lt.s32.totalorder %s137, 31
        %s139 = scalar_select %p138, %s137, 31
        %s140 = smul.addr %s139, 8
        %s141 = scalar_lea.vmem %s0, %s140
        %s142 = smul.u32 16, %s16
        %v143 = vld [vmem:[%s1] sm:$0x1]
        %v144 = vld [vmem:[%s141] sm:$0xff]
        %v145 = vld [vmem:[%s141 + $0x8] sm:$0xff]
        %v146 = vld [vmem:[%s141 + $0x10] sm:$0xff]
        %v147 = vld [vmem:[%s141 + $0x18] sm:$0xff]
        %v148 = vld [vmem:[%s141 + $0x20] sm:$0xff]
        %v149 = vld [vmem:[%s141 + $0x28] sm:$0xff]
        %v150 = vld [vmem:[%s141 + $0x30] sm:$0xff]
        %v151 = vld [vmem:[%s141 + $0x38] sm:$0xff]
        %v152 = vld [vmem:[%s141 + $0x40] sm:$0xff]
        %v153 = vld [vmem:[%s141 + $0x48] sm:$0xff]
        %v154 = vld [vmem:[%s141 + $0x50] sm:$0xff]
        %v155 = vld [vmem:[%s141 + $0x58] sm:$0xff]
        %v156 = vld [vmem:[%s141 + $0x60] sm:$0xff]
        %v157 = vld [vmem:[%s141 + $0x68] sm:$0xff]
        %v158 = vld [vmem:[%s141 + $0x70] sm:$0xff]
        %v159 = vld [vmem:[%s141 + $0x78] sm:$0xff]
        %vm160 = vcmask 130048
        %v162 = vsel %vm160, %v143, 0
        %v165 = vsel %vm160, %v144, 0
        %v168 = vsel %vm160, %v145, 0
        %v171 = vsel %vm160, %v146, 0
        %v174 = vsel %vm160, %v147, 0
        %v177 = vsel %vm160, %v148, 0
        %v180 = vsel %vm160, %v149, 0
        %v183 = vsel %vm160, %v150, 0
        %v186 = vsel %vm160, %v151, 0
        %v189 = vsel %vm160, %v152, 0
        %v192 = vsel %vm160, %v153, 0
        %v195 = vsel %vm160, %v154, 0
        %v198 = vsel %vm160, %v155, 0
        %v201 = vsel %vm160, %v156, 0
        %v204 = vsel %vm160, %v157, 0
        %v207 = vsel %vm160, %v158, 0
        %v210 = vsel %vm160, %v159, 0
        %212 = vmatpush.xpose.msra.mxu0 %v210
        %213 = vmatpush.xpose.msra.mxu0 %v207
        %214 = vmatpush.xpose.msra.mxu0 %v204
        %215 = vmatpush.xpose.msra.mxu0 %v201
        %216 = vmatpush.xpose.msra.mxu0 %v198
        %217 = vmatpush.xpose.msra.mxu0 %v195
        %218 = vmatpush.xpose.msra.mxu0 %v192
        %219 = vmatpush.xpose.msra.mxu0 %v189
        %220 = vmatpush.xpose.msra.mxu0 %v186
        %221 = vmatpush.xpose.msra.mxu0 %v183
        %222 = vmatpush.xpose.msra.mxu0 %v180
        %223 = vmatpush.xpose.msra.mxu0 %v177
        %224 = vmatpush.xpose.msra.mxu0 %v174
        %225 = vmatpush.xpose.msra.mxu0 %v171
        %226 = vmatpush.xpose.msra.mxu0 %v168
        %227 = vmatpush.xpose.msra.mxu0 %v165
        %228 = vmatmul.f32.gmra.mxu0 %v162
        %v229 = vpop.f32.mrf.mxu0
        %v230 = vadd.f32 0.0, %v229
        %231 = vdwg.mxu0
        %v232 = vtanh.pop %v230
        %233 = vst [vmem:[%s136] sm:$0x1] %v232
        %s234 = sand.u32 %s71, 1
        %s235 = scalar_lea.sflag [#allocation3], %s234
        %s236 = sand.u32 %s71, 1
        %s237 = scalar_lea.vmem [#allocation2], %s236
        // Predicated region
        $region29: #{fcn2_forward.1} parent=27 // pred_check
          %p238 = pneg %p81
        $region30: #{fcn2_forward.1} parent=27 // pred_check_branch
          %240 = sbr.rel (%p238) target = $region32
        $region31: #{fcn2_forward.1} parent=27 // pred_region
          %242 = vsyncadd %s235, 0
          %s243 = scalar_lea.hbm %s2, %s16
          %s245 = sshll.u32 %s237, 4
          %s246 = int_to_ptr.vmem [resolvable:$true] %s245
          %s247 = sshll.u32 %s243, 4
          %s248 = int_to_ptr.hbm [resolvable:$true] %s247
          %250 = dma.vmem_to_hbm [thread:$0]  %s246, 16, %s248, %s235
        $region32: #{fcn2_forward.1} parent=27 // pred_fallthru
          _
      $region28: #{fcn2_forward.1} parent=5 // pred_fallthru
        _
      %p251 = scmp.le.s32.totalorder 2, %s11
      // Predicated region
      $region33: #{fcn2_forward.1} parent=5 // pred_check
        %p252 = pneg %p251
      $region34: #{fcn2_forward.1} parent=5 // pred_check_branch
        %254 = sbr.rel (%p252) target = $region36
      $region35: #{fcn2_forward.1} parent=5 // pred_region
        %s255 = ssub.s32 %s11, 2
        // Predicated region
        $region37: #{fcn2_forward.1} parent=35 // pred_check
          %p256 = pneg %p87
        $region38: #{fcn2_forward.1} parent=35 // pred_check_branch
          %258 = sbr.rel (%p256) target = $region40
        $region39: #{fcn2_forward.1} parent=35 // pred_region
          %s259 = sand.u32 %s72, 1
          %s260 = scalar_lea.sflag [#allocation3], %s259
          %s261 = sand.u32 %s72, 1
          %s262 = scalar_lea.vmem [#allocation2], %s261
          %264 = dma.done %s260, 16
        $region40: #{fcn2_forward.1} parent=35 // pred_fallthru
          _
      $region36: #{fcn2_forward.1} parent=5 // pred_fallthru
        _
    $region6: #{fcn2_forward.1} parent=1 // loop_footer
      %s15 = sadd.s32 1, %s11
    $region7: #{fcn2_forward.1} parent=1 // loop_footer_branch
      %10 = sbr.rel target = $region3
    $region8: #{fcn2_forward.1} parent=1 // loop_exit
      _
    %265 = vsyncpa [#allocation3], 1
    %s266 = scalar_lea.sflag [#allocation3], 1
    %267 = vsyncpa %s266, 1

</llo_original>
